<compile_context>
chip_gen: v5e
topology: v5e:2x2
jax: 0.10.0
libtpu: 0.0.40
codegen_flags: <defaults>
</compile_context>

<pallas_src>
import functools

import jax
import jax.numpy as jnp
from jax.experimental import pallas as pl
from jax.experimental.pallas import tpu as pltpu

_HI = jax.lax.Precision.HIGHEST


def model_kernel(*refs, B, S, H, p_drop, dropout_mode):
    # dropout_mode: 0 = no dropout (eval), 1 = external uint32 bits in VMEM,
    #               2 = in-kernel hardware PRNG (scalar seed in SMEM).
    if dropout_mode == 0:
        x_ref, w_ref, o_ref = refs
        extra_ref = None
    else:
        x_ref, w_ref, extra_ref, o_ref = refs

    x2 = x_ref[...]          # (B*S, H)  native dtype, fed straight to the MXU
    w = w_ref[...]           # (2H, H)   rows [0:H] = query, rows [H:2H] = key

    # --- one fused MXU push:  [x @ query.T | x @ key.T]  -> (B*S, 2H) ----------
    fused = jax.lax.dot_general(
        x2, w, (((1,), (1,)), ((), ())),
        preferred_element_type=jnp.float32, precision=_HI)
    v7 = fused[:, :H]        # x @ query.T   (flattened (B*S, H))
    v11 = fused[:, H:]       # x @ key.T

    # --- v9[k] = sum_i v7[i, i, k] : vectorized masked row-reduce ---------------
    # Diagonal rows of the flattened (B*S, H) layout are r = i*(S+1), i < min(B,S).
    nd = min(B, S)
    r = jax.lax.broadcasted_iota(jnp.int32, (B * S, H), 0)
    diag_mask = jnp.logical_and(r % (S + 1) == 0, r < nd * (S + 1))
    v9 = jnp.sum(jnp.where(diag_mask, v7, 0.0), axis=0, keepdims=True)   # (1, H)
    v10 = 1.0 / v9           # exact reciprocal (matches torch.reciprocal)

    # --- v12 = v11 * v10 ; softmax over the sequence dim (dim=1) ---------------
    v12 = (v11 * v10).reshape(B, S, H)
    m = jnp.max(v12, axis=1, keepdims=True)
    e = jnp.exp(v12 - m)
    denom = jnp.sum(e, axis=1, keepdims=True)
    v13 = (e / denom).reshape(B * S, H)      # exact divide; denom is tiny (B,1,H)

    # --- dropout(p=0.2), training semantics -------------------------------------
    # TODO(synk): torch's dropout RNG stream cannot be reproduced bit-for-bit.
    if dropout_mode == 0:
        v14 = v13
    else:
        if dropout_mode == 2:
            pltpu.prng_seed(extra_ref[0])
            bits = pltpu.bitcast(pltpu.prng_random_bits((B * S, H)), jnp.uint32)
        else:
            bits = extra_ref[...]                             # uint32 (B*S, H)
        thresh = jnp.uint32(int(p_drop * (2.0 ** 32)))        # drop if bits < thresh
        keep_scale = jnp.where(bits >= thresh,
                               jnp.float32(1.0 / (1.0 - p_drop)),
                               jnp.float32(0.0))               # 1/(1-p) folded in
        v14 = v13 * keep_scale

    # --- v15 = v14 @ query -------------------------------------------------------
    q = w[:H, :]                                              # query rows of the stack
    v15 = jax.lax.dot_general(
        v14, q, (((1,), (0,)), ((), ())),
        preferred_element_type=jnp.float32, precision=_HI)
    o_ref[...] = v15.astype(o_ref.dtype)


def model_forward(x, query, key_w, *, rng_key=None, training=True, p_drop=0.2,
                  use_kernel_prng=False):
    B, S, H = x.shape
    assert query.shape == (H, H) and key_w.shape == (H, H)

    x2 = x.reshape(B * S, H)                       # free contiguous reshape
    w = jnp.concatenate([query, key_w], axis=0)    # (2H, H) stacked weights

    vmem = pl.BlockSpec(memory_space=pltpu.MemorySpace.VMEM)
    smem = pl.BlockSpec(memory_space=pltpu.MemorySpace.SMEM)

    if not training:
        dropout_mode = 0
        extra_args, extra_specs = (), ()
    elif use_kernel_prng:
        dropout_mode = 2
        if rng_key is None:
            rng_key = jax.random.PRNGKey(0)
        seed = jax.random.randint(rng_key, (1,), 0, 2 ** 31 - 1, dtype=jnp.int32)
        extra_args, extra_specs = (seed,), (smem,)
    else:
        dropout_mode = 1
        if rng_key is None:
            rng_key = jax.random.PRNGKey(0)
        bits = jax.random.bits(rng_key, (B * S, H), dtype=jnp.uint32)
        extra_args, extra_specs = (bits,), (vmem,)

    kernel = functools.partial(model_kernel, B=B, S=S, H=H, p_drop=p_drop,
                               dropout_mode=dropout_mode)
    out2 = pl.pallas_call(
        kernel,
        out_shape=jax.ShapeDtypeStruct((B * S, H), x.dtype),
        in_specs=[vmem, vmem, *extra_specs],
        out_specs=vmem,
    )(x2, w, *extra_args)
    return out2.reshape(B, S, H)


def ref_forward_no_dropout(x, q, kw):
    """Pure-JAX reference (dropout disabled), full-precision matmuls."""
    v7 = jnp.einsum('bsh,kh->bsk', x, q, precision=_HI)
    nd = min(x.shape[0], x.shape[1])
    v8 = v7[jnp.arange(nd), jnp.arange(nd), :]      # (nd, H)
    v9 = v8.sum(axis=0)                             # (H,)
    v10 = 1.0 / v9
    v11 = jnp.einsum('bsh,kh->bsk', x, kw, precision=_HI)
    v12 = v11 * v10
    v13 = jax.nn.softmax(v12, axis=1)
    return jnp.einsum('bsk,kh->bsh', v13, q, precision=_HI)


if __name__ == "__main__":
    # x3 = torch.randn(5, 8, 32)  => hidden_dim = 32
    B, S, H = 5, 8, 32
    root = jax.random.PRNGKey(0)
    kx, kq, kk, kd = jax.random.split(root, 4)
    x3 = jax.random.normal(kx, (B, S, H), dtype=jnp.float32)
    query = jax.random.normal(kq, (H, H), dtype=jnp.float32)
    key_w = jax.random.normal(kk, (H, H), dtype=jnp.float32)

    # Correctness check against pure-JAX reference (dropout off / eval mode).
    out_eval = jax.block_until_ready(model_forward(x3, query, key_w, training=False))
    ref = ref_forward_no_dropout(x3, query, key_w)
    assert out_eval.shape == (B, S, H)
    assert bool(jnp.allclose(out_eval, ref, rtol=2e-3, atol=2e-3)), (
        "mismatch vs reference: max abs err = "
        f"{float(jnp.max(jnp.abs(out_eval - ref)))}")

    # Main run matching F.dropout defaults (training=True, p=0.2).
    # use_kernel_prng=True enables the in-kernel hardware PRNG path on real TPU.
    out = jax.block_until_ready(
        model_forward(x3, query, key_w, rng_key=kd, training=True, p_drop=0.2))
    assert out.shape == (B, S, H)
    assert bool(jnp.all(jnp.isfinite(out)))

    print("KERNEL_OK")
</pallas_src>

<mosaic_0001>
module attributes {stable_mosaic.version = 11 : i64} {
  func.func @model_kernel(%arg0: memref<40x32xf32, #tpu.memory_space<vmem>>, %arg1: memref<64x32xf32, #tpu.memory_space<vmem>>, %arg2: memref<40x32xf32, #tpu.memory_space<vmem>>) attributes {dimension_semantics = [], scalar_prefetch = 0 : i64, scratch_operands = 0 : i64, tpu.core_type = #tpu.core_type<tc>} {
    %c0 = arith.constant 0 : index
    %c0_0 = arith.constant 0 : index
    %0 = vector.load %arg0[%c0, %c0_0] : memref<40x32xf32, #tpu.memory_space<vmem>>, vector<40x32xf32>
    %c0_1 = arith.constant 0 : index
    %c0_2 = arith.constant 0 : index
    %1 = vector.load %arg1[%c0_1, %c0_2] : memref<64x32xf32, #tpu.memory_space<vmem>>, vector<64x32xf32>
    %cst = arith.constant dense<0.000000e+00> : vector<40x64xf32>
    %2 = tpu.matmul %0, %1, %cst {dimension_numbers = #tpu.dot_dimension_numbers<[1], [1], [0], [0], [0, 0, 1, 0], [], []>, precision = #tpu.contract_precision<fp32>} : vector<40x32xf32>, vector<64x32xf32>, vector<40x64xf32> -> vector<40x64xf32>
    %3 = vector.extract_strided_slice %2 {offsets = [0, 0], sizes = [40, 32], strides = [1, 1]} : vector<40x64xf32> to vector<40x32xf32>
    %4 = vector.extract_strided_slice %2 {offsets = [0, 32], sizes = [40, 32], strides = [1, 1]} : vector<40x64xf32> to vector<40x32xf32>
    %5 = tpu.iota {dimensions = array<i32: 0>} : vector<40x32xi32>
    %c9_i32 = arith.constant 9 : i32
    %c0_i32 = arith.constant 0 : i32
    %6 = arith.cmpi eq, %c9_i32, %c0_i32 : i32
    %c1_i32 = arith.constant 1 : i32
    %7 = arith.select %6, %c1_i32, %c9_i32 : i32
    %8 = vector.broadcast %7 : i32 to vector<40x32xi32>
    %9 = arith.remsi %5, %8 : vector<40x32xi32>
    %c0_i32_3 = arith.constant 0 : i32
    %10 = vector.broadcast %c0_i32_3 : i32 to vector<40x32xi32>
    %11 = arith.cmpi ne, %9, %10 : vector<40x32xi32>
    %c0_i32_4 = arith.constant 0 : i32
    %12 = vector.broadcast %c0_i32_4 : i32 to vector<40x32xi32>
    %13 = arith.cmpi slt, %9, %12 : vector<40x32xi32>
    %c0_i32_5 = arith.constant 0 : i32
    %14 = arith.cmpi slt, %7, %c0_i32_5 : i32
    %15 = vector.broadcast %14 : i1 to vector<40x32xi1>
    %16 = vector.broadcast %15 : vector<40x32xi1> to vector<40x32xi1>
    %17 = arith.xori %13, %16 : vector<40x32xi1>
    %18 = arith.andi %17, %11 : vector<40x32xi1>
    %19 = vector.broadcast %7 : i32 to vector<40x32xi32>
    %20 = arith.addi %9, %19 : vector<40x32xi32>
    %21 = arith.select %18, %20, %9 : vector<40x32xi1>, vector<40x32xi32>
    %c0_i32_6 = arith.constant 0 : i32
    %22 = vector.broadcast %c0_i32_6 : i32 to vector<40x32xi32>
    %23 = arith.cmpi eq, %21, %22 : vector<40x32xi32>
    %c45_i32 = arith.constant 45 : i32
    %24 = vector.broadcast %c45_i32 : i32 to vector<40x32xi32>
    %25 = arith.cmpi slt, %5, %24 : vector<40x32xi32>
    %26 = arith.andi %23, %25 : vector<40x32xi1>
    %cst_7 = arith.constant 0.000000e+00 : f32
    %27 = vector.broadcast %cst_7 : f32 to vector<40x32xf32>
    %28 = arith.select %26, %3, %27 : vector<40x32xi1>, vector<40x32xf32>
    %cst_8 = arith.constant dense<0.000000e+00> : vector<32xf32>
    %29 = vector.multi_reduction <add>, %28, %cst_8 [0] : vector<40x32xf32> to vector<32xf32>
    %30 = vector.shape_cast %29 : vector<32xf32> to vector<1x32xf32>
    %cst_9 = arith.constant 1.000000e+00 : f32
    %31 = vector.broadcast %cst_9 : f32 to vector<1x32xf32>
    %32 = arith.divf %31, %30 : vector<1x32xf32>
    %33 = vector.broadcast %32 : vector<1x32xf32> to vector<40x32xf32>
    %34 = arith.mulf %4, %33 : vector<40x32xf32>
    %35 = vector.shape_cast %34 : vector<40x32xf32> to vector<5x8x32xf32>
    %cst_10 = arith.constant dense<0xFF800000> : vector<5x32xf32>
    %36 = vector.multi_reduction <maximumf>, %35, %cst_10 [1] : vector<5x8x32xf32> to vector<5x32xf32>
    %37 = vector.shape_cast %36 : vector<5x32xf32> to vector<5x1x32xf32>
    %38 = vector.broadcast %37 : vector<5x1x32xf32> to vector<5x8x32xf32>
    %39 = arith.subf %35, %38 : vector<5x8x32xf32>
    %40 = math.exp %39 : vector<5x8x32xf32>
    %cst_11 = arith.constant dense<0.000000e+00> : vector<5x32xf32>
    %41 = vector.multi_reduction <add>, %40, %cst_11 [1] : vector<5x8x32xf32> to vector<5x32xf32>
    %42 = vector.shape_cast %41 : vector<5x32xf32> to vector<5x1x32xf32>
    %43 = vector.broadcast %42 : vector<5x1x32xf32> to vector<5x8x32xf32>
    %44 = arith.divf %40, %43 : vector<5x8x32xf32>
    %45 = vector.shape_cast %44 : vector<5x8x32xf32> to vector<40x32xf32>
    %46 = vector.extract_strided_slice %1 {offsets = [0, 0], sizes = [32, 32], strides = [1, 1]} : vector<64x32xf32> to vector<32x32xf32>
    %cst_12 = arith.constant dense<0.000000e+00> : vector<40x32xf32>
    %47 = tpu.matmul %45, %46, %cst_12 {dimension_numbers = #tpu.dot_dimension_numbers<[1], [0], [0], [1], [0, 0, 1, 1], [], []>, precision = #tpu.contract_precision<fp32>} : vector<40x32xf32>, vector<32x32xf32>, vector<40x32xf32> -> vector<40x32xf32>
    %c0_13 = arith.constant 0 : index
    %c0_14 = arith.constant 0 : index
    %48 = vector.load %arg2[%c0_13, %c0_14] : memref<40x32xf32, #tpu.memory_space<vmem>>, vector<40x32xf32>
    tpu.vector_store %arg2[%c0_13, %c0_14], %47 {strides = array<i32>} : memref<40x32xf32, #tpu.memory_space<vmem>>, vector<40x32xf32>,
    return
  }
}

</mosaic_0001>

<llo_original>
// kernel: tpu_custom_call.1
$region0: #{tpu_custom_call.1}
  #allocation0 [shape = 'u32[]', space=smem, size = 0x4, offset = 0x4, fixed_abs, tag = 'smem constant byte address 0x4 - core index']
  #allocation1 [shape = 'u32[72,128]{1,0:T(1,128)}', space=vmem, size = 0x9000, scoped, tag = 'internal scratch']
  %s0 = inlined_call_operand.vmem [shape: f32[40,32], index: 0, kind: input, shape index: {}]
  %s1 = inlined_call_operand.vmem [shape: f32[64,32], index: 1, kind: input, shape index: {}]
  %s2 = inlined_call_operand.vmem [shape: f32[40,32], index: 2, kind: output, shape index: {}]
  %s3 = sld [smem:[#allocation0]]
  $region18: #{tpu_custom_call.1} parent=0
    _
  %s5 = ssub.s32 1, %s3
  %s6 = scalar_select 0, %s5, %s3
  // Predicated region
  $region2: #{tpu_custom_call.1} parent=0 // pred_check
    _
  $region3: #{tpu_custom_call.1} parent=0 // pred_check_branch
    %8 = sbr.rel (0) target = $region5
  $region4: #{tpu_custom_call.1} parent=0 // pred_region
    _
  $region5: #{tpu_custom_call.1} parent=0 // pred_fallthru
    _
  // Predicated region
  $region6: #{tpu_custom_call.1} parent=0 // pred_check
    _
  $region7: #{tpu_custom_call.1} parent=0 // pred_check_branch
    %10 = sbr.rel (0) target = $region9
  $region8: #{tpu_custom_call.1} parent=0 // pred_region
    _
  $region9: #{tpu_custom_call.1} parent=0 // pred_fallthru
    _
  %v11 = vld [vmem:[%s0] sm:$0xff]
  %v12 = vld [vmem:[%s0 + $0x8] sm:$0xff]
  %v13 = vld [vmem:[%s0 + $0x10] sm:$0xff]
  %v14 = vld [vmem:[%s0 + $0x18] sm:$0xff]
  %v15 = vld [vmem:[%s0 + $0x20] sm:$0xff]
  %v16 = vld [vmem:[%s1] sm:$0xff]
  %v17 = vld [vmem:[%s1 + $0x8] sm:$0xff]
  %v18 = vld [vmem:[%s1 + $0x10] sm:$0xff]
  %v19 = vld [vmem:[%s1 + $0x18] sm:$0xff]
  %v20 = vld [vmem:[%s1 + $0x20] sm:$0xff]
  %v21 = vld [vmem:[%s1 + $0x28] sm:$0xff]
  %v22 = vld [vmem:[%s1 + $0x30] sm:$0xff]
  %v23 = vld [vmem:[%s1 + $0x38] sm:$0xff]
  %vm24 = vcmask 261120
  %v26 = vsel %vm24, %v11, 0
  %v29 = vsel %vm24, %v12, 0
  %v32 = vsel %vm24, %v13, 0
  %v35 = vsel %vm24, %v14, 0
  %v38 = vsel %vm24, %v15, 0
  %v41 = vsel %vm24, %v16, 0
  %v44 = vsel %vm24, %v17, 0
  %v47 = vsel %vm24, %v18, 0
  %v50 = vsel %vm24, %v19, 0
  %v53 = vsel %vm24, %v20, 0
  %v56 = vsel %vm24, %v21, 0
  %v59 = vsel %vm24, %v22, 0
  %v62 = vsel %vm24, %v23, 0
  %64 = vmatpush.xpose.msra.mxu0 0.0
  %65 = vmatpush.xpose.msra.mxu0 0.0
  %66 = vmatpush.xpose.msra.mxu0 0.0
  %67 = vmatpush.xpose.msra.mxu0 0.0
  %68 = vmatpush.xpose.msra.mxu0 0.0
  %69 = vmatpush.xpose.msra.mxu0 0.0
  %70 = vmatpush.xpose.msra.mxu0 0.0
  %71 = vmatpush.xpose.msra.mxu0 0.0
  %v72 = vand.u32 %v62, 4294901760
  %73 = vmatpush.xpose.msra.mxu0 %v72
  %v74 = vand.u32 %v59, 4294901760
  %75 = vmatpush.xpose.msra.mxu0 %v74
  %v76 = vand.u32 %v56, 4294901760
  %77 = vmatpush.xpose.msra.mxu0 %v76
  %v78 = vand.u32 %v53, 4294901760
  %79 = vmatpush.xpose.msra.mxu0 %v78
  %v80 = vand.u32 %v50, 4294901760
  %81 = vmatpush.xpose.msra.mxu0 %v80
  %v82 = vand.u32 %v47, 4294901760
  %83 = vmatpush.xpose.msra.mxu0 %v82
  %v84 = vand.u32 %v44, 4294901760
  %85 = vmatpush.xpose.msra.mxu0 %v84
  %v86 = vand.u32 %v41, 4294901760
  %87 = vmatpush.xpose.msra.mxu0 %v86
  %v88 = vand.u32 %v26, 4294901760
  %v89 = vsub.f32 %v26, %v88
  %v90 = vand.u32 %v89, 4294901760
  %v91 = vsub.f32 %v89, %v90
  %v92 = vand.u32 %v91, 4294901760
  %93 = vmatmul.f32.gmra.mxu0 %v92
  %v94 = vpop.f32.mrf.mxu0
  %v95 = vadd.f32 0.0, %v94
  %v96 = vand.u32 %v29, 4294901760
  %v97 = vsub.f32 %v29, %v96
  %v98 = vand.u32 %v97, 4294901760
  %v99 = vsub.f32 %v97, %v98
  %v100 = vand.u32 %v99, 4294901760
  %101 = vmatmul.f32.gmra.mxu0 %v100
  %v102 = vpop.f32.mrf.mxu0
  %v103 = vadd.f32 0.0, %v102
  %v104 = vand.u32 %v32, 4294901760
  %v105 = vsub.f32 %v32, %v104
  %v106 = vand.u32 %v105, 4294901760
  %v107 = vsub.f32 %v105, %v106
  %v108 = vand.u32 %v107, 4294901760
  %109 = vmatmul.f32.gmra.mxu0 %v108
  %v110 = vpop.f32.mrf.mxu0
  %v111 = vadd.f32 0.0, %v110
  %v112 = vand.u32 %v35, 4294901760
  %v113 = vsub.f32 %v35, %v112
  %v114 = vand.u32 %v113, 4294901760
  %v115 = vsub.f32 %v113, %v114
  %v116 = vand.u32 %v115, 4294901760
  %117 = vmatmul.f32.gmra.mxu0 %v116
  %v118 = vpop.f32.mrf.mxu0
  %v119 = vadd.f32 0.0, %v118
  %v120 = vand.u32 %v38, 4294901760
  %v121 = vsub.f32 %v38, %v120
  %v122 = vand.u32 %v121, 4294901760
  %v123 = vsub.f32 %v121, %v122
  %v124 = vand.u32 %v123, 4294901760
  %125 = vmatmul.f32.gmra.mxu0 %v124
  %v126 = vpop.f32.mrf.mxu0
  %v127 = vadd.f32 0.0, %v126
  %128 = vdwg.mxu0
  %129 = vmatpush.xpose.msra.mxu0 0.0
  %130 = vmatpush.xpose.msra.mxu0 0.0
  %131 = vmatpush.xpose.msra.mxu0 0.0
  %132 = vmatpush.xpose.msra.mxu0 0.0
  %133 = vmatpush.xpose.msra.mxu0 0.0
  %134 = vmatpush.xpose.msra.mxu0 0.0
  %135 = vmatpush.xpose.msra.mxu0 0.0
  %136 = vmatpush.xpose.msra.mxu0 0.0
  %v137 = vand.u32 %v62, 4294901760
  %v138 = vsub.f32 %v62, %v137
  %v139 = vand.u32 %v138, 4294901760
  %v140 = vsub.f32 %v138, %v139
  %v141 = vand.u32 %v140, 4294901760
  %142 = vmatpush.xpose.msra.mxu0 %v141
  %v143 = vand.u32 %v59, 4294901760
  %v144 = vsub.f32 %v59, %v143
  %v145 = vand.u32 %v144, 4294901760
  %v146 = vsub.f32 %v144, %v145
  %v147 = vand.u32 %v146, 4294901760
  %148 = vmatpush.xpose.msra.mxu0 %v147
  %v149 = vand.u32 %v56, 4294901760
  %v150 = vsub.f32 %v56, %v149
  %v151 = vand.u32 %v150, 4294901760
  %v152 = vsub.f32 %v150, %v151
  %v153 = vand.u32 %v152, 4294901760
  %154 = vmatpush.xpose.msra.mxu0 %v153
  %v155 = vand.u32 %v53, 4294901760
  %v156 = vsub.f32 %v53, %v155
  %v157 = vand.u32 %v156, 4294901760
  %v158 = vsub.f32 %v156, %v157
  %v159 = vand.u32 %v158, 4294901760
  %160 = vmatpush.xpose.msra.mxu0 %v159
  %v161 = vand.u32 %v50, 4294901760
  %v162 = vsub.f32 %v50, %v161
  %v163 = vand.u32 %v162, 4294901760
  %v164 = vsub.f32 %v162, %v163
  %v165 = vand.u32 %v164, 4294901760
  %166 = vmatpush.xpose.msra.mxu0 %v165
  %v167 = vand.u32 %v47, 4294901760
  %v168 = vsub.f32 %v47, %v167
  %v169 = vand.u32 %v168, 4294901760
  %v170 = vsub.f32 %v168, %v169
  %v171 = vand.u32 %v170, 4294901760
  %172 = vmatpush.xpose.msra.mxu0 %v171
  %v173 = vand.u32 %v44, 4294901760
  %v174 = vsub.f32 %v44, %v173
  %v175 = vand.u32 %v174, 4294901760
  %v176 = vsub.f32 %v174, %v175
  %v177 = vand.u32 %v176, 4294901760
  %178 = vmatpush.xpose.msra.mxu0 %v177
  %v179 = vand.u32 %v41, 4294901760
  %v180 = vsub.f32 %v41, %v179
  %v181 = vand.u32 %v180, 4294901760
  %v182 = vsub.f32 %v180, %v181
  %v183 = vand.u32 %v182, 4294901760
  %184 = vmatpush.xpose.msra.mxu0 %v183
  %v185 = vand.u32 %v26, 4294901760
  %186 = vmatmul.f32.gmra.mxu0 %v185
  %v187 = vpop.f32.mrf.mxu0
  %v188 = vadd.f32 %v95, %v187
  %v189 = vand.u32 %v29, 4294901760
  %190 = vmatmul.f32.gmra.mxu0 %v189
  %v191 = vpop.f32.mrf.mxu0
  %v192 = vadd.f32 %v103, %v191
  %v193 = vand.u32 %v32, 4294901760
  %194 = vmatmul.f32.gmra.mxu0 %v193
  %v195 = vpop.f32.mrf.mxu0
  %v196 = vadd.f32 %v111, %v195
  %v197 = vand.u32 %v35, 4294901760
  %198 = vmatmul.f32.gmra.mxu0 %v197
  %v199 = vpop.f32.mrf.mxu0
  %v200 = vadd.f32 %v119, %v199
  %v201 = vand.u32 %v38, 4294901760
  %202 = vmatmul.f32.gmra.mxu0 %v201
  %v203 = vpop.f32.mrf.mxu0
  %v204 = vadd.f32 %v127, %v203
  %205 = vdwg.mxu0
  %206 = vmatpush.xpose.msra.mxu0 0.0
  %207 = vmatpush.xpose.msra.mxu0 0.0
  %208 = vmatpush.xpose.msra.mxu0 0.0
  %209 = vmatpush.xpose.msra.mxu0 0.0
  %210 = vmatpush.xpose.msra.mxu0 0.0
  %211 = vmatpush.xpose.msra.mxu0 0.0
  %212 = vmatpush.xpose.msra.mxu0 0.0
  %213 = vmatpush.xpose.msra.mxu0 0.0
  %v214 = vand.u32 %v62, 4294901760
  %v215 = vsub.f32 %v62, %v214
  %216 = vmatpush.xpose.msra.mxu0 %v215
  %v217 = vand.u32 %v59, 4294901760
  %v218 = vsub.f32 %v59, %v217
  %219 = vmatpush.xpose.msra.mxu0 %v218
  %v220 = vand.u32 %v56, 4294901760
  %v221 = vsub.f32 %v56, %v220
  %222 = vmatpush.xpose.msra.mxu0 %v221
  %v223 = vand.u32 %v53, 4294901760
  %v224 = vsub.f32 %v53, %v223
  %225 = vmatpush.xpose.msra.mxu0 %v224
  %v226 = vand.u32 %v50, 4294901760
  %v227 = vsub.f32 %v50, %v226
  %228 = vmatpush.xpose.msra.mxu0 %v227
  %v229 = vand.u32 %v47, 4294901760
  %v230 = vsub.f32 %v47, %v229
  %231 = vmatpush.xpose.msra.mxu0 %v230
  %v232 = vand.u32 %v44, 4294901760
  %v233 = vsub.f32 %v44, %v232
  %234 = vmatpush.xpose.msra.mxu0 %v233
  %v235 = vand.u32 %v41, 4294901760
  %v236 = vsub.f32 %v41, %v235
  %237 = vmatpush.xpose.msra.mxu0 %v236
  %v238 = vand.u32 %v26, 4294901760
  %v239 = vsub.f32 %v26, %v238
  %240 = vmatmul.f32.gmra.mxu0 %v239
  %v241 = vpop.f32.mrf.mxu0
  %v242 = vadd.f32 %v188, %v241
  %v243 = vand.u32 %v29, 4294901760
  %v244 = vsub.f32 %v29, %v243
  %245 = vmatmul.f32.gmra.mxu0 %v244
  %v246 = vpop.f32.mrf.mxu0
  %v247 = vadd.f32 %v192, %v246
  %v248 = vand.u32 %v32, 4294901760
  %v249 = vsub.f32 %v32, %v248
  %250 = vmatmul.f32.gmra.mxu0 %v249
  %v251 = vpop.f32.mrf.mxu0
  %v252 = vadd.f32 %v196, %v251
  %v253 = vand.u32 %v35, 4294901760
  %v254 = vsub.f32 %v35, %v253
  %255 = vmatmul.f32.gmra.mxu0 %v254
  %v256 = vpop.f32.mrf.mxu0
  %v257 = vadd.f32 %v200, %v256
  %v258 = vand.u32 %v38, 4294901760
  %v259 = vsub.f32 %v38, %v258
  %260 = vmatmul.f32.gmra.mxu0 %v259
  %v261 = vpop.f32.mrf.mxu0
  %v262 = vadd.f32 %v204, %v261
  %263 = vdwg.mxu0
  %264 = vmatpush.xpose.msra.mxu0 0.0
  %265 = vmatpush.xpose.msra.mxu0 0.0
  %266 = vmatpush.xpose.msra.mxu0 0.0
  %267 = vmatpush.xpose.msra.mxu0 0.0
  %268 = vmatpush.xpose.msra.mxu0 0.0
  %269 = vmatpush.xpose.msra.mxu0 0.0
  %270 = vmatpush.xpose.msra.mxu0 0.0
  %271 = vmatpush.xpose.msra.mxu0 0.0
  %v272 = vand.u32 %v62, 4294901760
  %273 = vmatpush.xpose.msra.mxu0 %v272
  %v274 = vand.u32 %v59, 4294901760
  %275 = vmatpush.xpose.msra.mxu0 %v274
  %v276 = vand.u32 %v56, 4294901760
  %277 = vmatpush.xpose.msra.mxu0 %v276
  %v278 = vand.u32 %v53, 4294901760
  %279 = vmatpush.xpose.msra.mxu0 %v278
  %v280 = vand.u32 %v50, 4294901760
  %281 = vmatpush.xpose.msra.mxu0 %v280
  %v282 = vand.u32 %v47, 4294901760
  %283 = vmatpush.xpose.msra.mxu0 %v282
  %v284 = vand.u32 %v44, 4294901760
  %285 = vmatpush.xpose.msra.mxu0 %v284
  %v286 = vand.u32 %v41, 4294901760
  %287 = vmatpush.xpose.msra.mxu0 %v286
  %v288 = vand.u32 %v26, 4294901760
  %v289 = vsub.f32 %v26, %v288
  %v290 = vand.u32 %v289, 4294901760
  %291 = vmatmul.f32.gmra.mxu0 %v290
  %v292 = vpop.f32.mrf.mxu0
  %v293 = vadd.f32 %v242, %v292
  %v294 = vand.u32 %v29, 4294901760
  %v295 = vsub.f32 %v29, %v294
  %v296 = vand.u32 %v295, 4294901760
  %297 = vmatmul.f32.gmra.mxu0 %v296
  %v298 = vpop.f32.mrf.mxu0
  %v299 = vadd.f32 %v247, %v298
  %v300 = vand.u32 %v32, 4294901760
  %v301 = vsub.f32 %v32, %v300
  %v302 = vand.u32 %v301, 4294901760
  %303 = vmatmul.f32.gmra.mxu0 %v302
  %v304 = vpop.f32.mrf.mxu0
  %v305 = vadd.f32 %v252, %v304
  %v306 = vand.u32 %v35, 4294901760
  %v307 = vsub.f32 %v35, %v306
  %v308 = vand.u32 %v307, 4294901760
  %309 = vmatmul.f32.gmra.mxu0 %v308
  %v310 = vpop.f32.mrf.mxu0
  %v311 = vadd.f32 %v257, %v310
  %v312 = vand.u32 %v38, 4294901760
  %v313 = vsub.f32 %v38, %v312
  %v314 = vand.u32 %v313, 4294901760
  %315 = vmatmul.f32.gmra.mxu0 %v314
  %v316 = vpop.f32.mrf.mxu0
  %v317 = vadd.f32 %v262, %v316
  %318 = vdwg.mxu0
  %319 = vmatpush.xpose.msra.mxu0 0.0
  %320 = vmatpush.xpose.msra.mxu0 0.0
  %321 = vmatpush.xpose.msra.mxu0 0.0
  %322 = vmatpush.xpose.msra.mxu0 0.0
  %323 = vmatpush.xpose.msra.mxu0 0.0
  %324 = vmatpush.xpose.msra.mxu0 0.0
  %325 = vmatpush.xpose.msra.mxu0 0.0
  %326 = vmatpush.xpose.msra.mxu0 0.0
  %v327 = vand.u32 %v62, 4294901760
  %v328 = vsub.f32 %v62, %v327
  %v329 = vand.u32 %v328, 4294901760
  %330 = vmatpush.xpose.msra.mxu0 %v329
  %v331 = vand.u32 %v59, 4294901760
  %v332 = vsub.f32 %v59, %v331
  %v333 = vand.u32 %v332, 4294901760
  %334 = vmatpush.xpose.msra.mxu0 %v333
  %v335 = vand.u32 %v56, 4294901760
  %v336 = vsub.f32 %v56, %v335
  %v337 = vand.u32 %v336, 4294901760
  %338 = vmatpush.xpose.msra.mxu0 %v337
  %v339 = vand.u32 %v53, 4294901760
  %v340 = vsub.f32 %v53, %v339
  %v341 = vand.u32 %v340, 4294901760
  %342 = vmatpush.xpose.msra.mxu0 %v341
  %v343 = vand.u32 %v50, 4294901760
  %v344 = vsub.f32 %v50, %v343
  %v345 = vand.u32 %v344, 4294901760
  %346 = vmatpush.xpose.msra.mxu0 %v345
  %v347 = vand.u32 %v47, 4294901760
  %v348 = vsub.f32 %v47, %v347
  %v349 = vand.u32 %v348, 4294901760
  %350 = vmatpush.xpose.msra.mxu0 %v349
  %v351 = vand.u32 %v44, 4294901760
  %v352 = vsub.f32 %v44, %v351
  %v353 = vand.u32 %v352, 4294901760
  %354 = vmatpush.xpose.msra.mxu0 %v353
  %v355 = vand.u32 %v41, 4294901760
  %v356 = vsub.f32 %v41, %v355
  %v357 = vand.u32 %v356, 4294901760
  %358 = vmatpush.xpose.msra.mxu0 %v357
  %v359 = vand.u32 %v26, 4294901760
  %360 = vmatmul.f32.gmra.mxu0 %v359
  %v361 = vpop.f32.mrf.mxu0
  %v362 = vadd.f32 %v293, %v361
  %v363 = vand.u32 %v29, 4294901760
  %364 = vmatmul.f32.gmra.mxu0 %v363
  %v365 = vpop.f32.mrf.mxu0
  %v366 = vadd.f32 %v299, %v365
  %v367 = vand.u32 %v32, 4294901760
  %368 = vmatmul.f32.gmra.mxu0 %v367
  %v369 = vpop.f32.mrf.mxu0
  %v370 = vadd.f32 %v305, %v369
  %v371 = vand.u32 %v35, 4294901760
  %372 = vmatmul.f32.gmra.mxu0 %v371
  %v373 = vpop.f32.mrf.mxu0
  %v374 = vadd.f32 %v311, %v373
  %v375 = vand.u32 %v38, 4294901760
  %376 = vmatmul.f32.gmra.mxu0 %v375
  %v377 = vpop.f32.mrf.mxu0
  %v378 = vadd.f32 %v317, %v377
  %379 = vdwg.mxu0
  %380 = vmatpush.xpose.msra.mxu0 0.0
  %381 = vmatpush.xpose.msra.mxu0 0.0
  %382 = vmatpush.xpose.msra.mxu0 0.0
  %383 = vmatpush.xpose.msra.mxu0 0.0
  %384 = vmatpush.xpose.msra.mxu0 0.0
  %385 = vmatpush.xpose.msra.mxu0 0.0
  %386 = vmatpush.xpose.msra.mxu0 0.0
  %387 = vmatpush.xpose.msra.mxu0 0.0
  %v388 = vand.u32 %v62, 4294901760
  %389 = vmatpush.xpose.msra.mxu0 %v388
  %v390 = vand.u32 %v59, 4294901760
  %391 = vmatpush.xpose.msra.mxu0 %v390
  %v392 = vand.u32 %v56, 4294901760
  %393 = vmatpush.xpose.msra.mxu0 %v392
  %v394 = vand.u32 %v53, 4294901760
  %395 = vmatpush.xpose.msra.mxu0 %v394
  %v396 = vand.u32 %v50, 4294901760
  %397 = vmatpush.xpose.msra.mxu0 %v396
  %v398 = vand.u32 %v47, 4294901760
  %399 = vmatpush.xpose.msra.mxu0 %v398
  %v400 = vand.u32 %v44, 4294901760
  %401 = vmatpush.xpose.msra.mxu0 %v400
  %v402 = vand.u32 %v41, 4294901760
  %403 = vmatpush.xpose.msra.mxu0 %v402
  %v404 = vand.u32 %v26, 4294901760
  %405 = vmatmul.f32.gmra.mxu0 %v404
  %v406 = vpop.f32.mrf.mxu0
  %v407 = vadd.f32 %v362, %v406
  %v408 = vand.u32 %v29, 4294901760
  %409 = vmatmul.f32.gmra.mxu0 %v408
  %v410 = vpop.f32.mrf.mxu0
  %v411 = vadd.f32 %v366, %v410
  %v412 = vand.u32 %v32, 4294901760
  %413 = vmatmul.f32.gmra.mxu0 %v412
  %v414 = vpop.f32.mrf.mxu0
  %v415 = vadd.f32 %v370, %v414
  %v416 = vand.u32 %v35, 4294901760
  %417 = vmatmul.f32.gmra.mxu0 %v416
  %v418 = vpop.f32.mrf.mxu0
  %v419 = vadd.f32 %v374, %v418
  %v420 = vand.u32 %v38, 4294901760
  %421 = vmatmul.f32.gmra.mxu0 %v420
  %v422 = vpop.f32.mrf.mxu0
  %v423 = vadd.f32 %v378, %v422
  %424 = vdwg.mxu0
  %v425 = vlaneseq
  %v426 = vshrl.u32 %v425, 7
  %v427 = vadd.s32 %v426, 8
  %v428 = vadd.s32 %v426, 16
  %v429 = vadd.s32 %v426, 24
  %v430 = vadd.s32 %v426, 32
  %vm431 = vcmp.lt.s32.totalorder %v426, 0
  %v432 = vsub.s32 0, %v426
  %v433 = vsel %vm431, %v432, %v426
  %v434 = vand.u32 %v433, 65535
  %v435 = vshrl.u32 %v433, 16
  %v437 = vmul.u32 %v434, 14564
  %v438 = vmul.u32 %v434, 58254
  %v439 = vmul.u32 %v435, 14564
  %v440 = vmul.u32 %v435, 58254
  %v441 = vshll.u32 %v438, 16
  %v442 = vshrl.u32 %v438, 16
  %v443 = vshll.u32 %v439, 16
  %v444 = vshrl.u32 %v439, 16
  %vm445 = vc.u32 %v437, %v441
  %v446 = vsel %vm445, 1, 0
  %v447 = vadd.s32 %v437, %v441
  %v448 = vadd.s32 %v440, %v446
  %vm449 = vc.u32 %v447, %v443
  %v450 = vsel %vm449, 1, 0
  %v451 = vadd.s32 %v447, %v443
  %v452 = vadd.s32 %v448, %v450
  %v453 = vadd.s32 %v452, %v442
  %v454 = vadd.s32 %v453, %v444
  %v455 = vshrl.u32 %v454, 3
  %v456 = vmul.u32 %v455, 9
  %v457 = vsub.s32 %v433, %v456
  %v458 = vsub.s32 0, %v457
  %v459 = vsel %vm431, %v458, %v457
  %vm460 = vcmp.lt.s32.totalorder %v427, 0
  %v461 = vsub.s32 0, %v427
  %v462 = vsel %vm460, %v461, %v427
  %v463 = vand.u32 %v462, 65535
  %v464 = vshrl.u32 %v462, 16
  %v466 = vmul.u32 %v463, 14564
  %v467 = vmul.u32 %v463, 58254
  %v468 = vmul.u32 %v464, 14564
  %v469 = vmul.u32 %v464, 58254
  %v470 = vshll.u32 %v467, 16
  %v471 = vshrl.u32 %v467, 16
  %v472 = vshll.u32 %v468, 16
  %v473 = vshrl.u32 %v468, 16
  %vm474 = vc.u32 %v466, %v470
  %v475 = vsel %vm474, 1, 0
  %v476 = vadd.s32 %v466, %v470
  %v477 = vadd.s32 %v469, %v475
  %vm478 = vc.u32 %v476, %v472
  %v479 = vsel %vm478, 1, 0
  %v480 = vadd.s32 %v476, %v472
  %v481 = vadd.s32 %v477, %v479
  %v482 = vadd.s32 %v481, %v471
  %v483 = vadd.s32 %v482, %v473
  %v484 = vshrl.u32 %v483, 3
  %v485 = vmul.u32 %v484, 9
  %v486 = vsub.s32 %v462, %v485
  %v487 = vsub.s32 0, %v486
  %v488 = vsel %vm460, %v487, %v486
  %vm489 = vcmp.lt.s32.totalorder %v428, 0
  %v490 = vsub.s32 0, %v428
  %v491 = vsel %vm489, %v490, %v428
  %v492 = vand.u32 %v491, 65535
  %v493 = vshrl.u32 %v491, 16
  %v495 = vmul.u32 %v492, 14564
  %v496 = vmul.u32 %v492, 58254
  %v497 = vmul.u32 %v493, 14564
  %v498 = vmul.u32 %v493, 58254
  %v499 = vshll.u32 %v496, 16
  %v500 = vshrl.u32 %v496, 16
  %v501 = vshll.u32 %v497, 16
  %v502 = vshrl.u32 %v497, 16
  %vm503 = vc.u32 %v495, %v499
  %v504 = vsel %vm503, 1, 0
  %v505 = vadd.s32 %v495, %v499
  %v506 = vadd.s32 %v498, %v504
  %vm507 = vc.u32 %v505, %v501
  %v508 = vsel %vm507, 1, 0
  %v509 = vadd.s32 %v505, %v501
  %v510 = vadd.s32 %v506, %v508
  %v511 = vadd.s32 %v510, %v500
  %v512 = vadd.s32 %v511, %v502
  %v513 = vshrl.u32 %v512, 3
  %v514 = vmul.u32 %v513, 9
  %v515 = vsub.s32 %v491, %v514
  %v516 = vsub.s32 0, %v515
  %v517 = vsel %vm489, %v516, %v515
  %vm518 = vcmp.lt.s32.totalorder %v429, 0
  %v519 = vsub.s32 0, %v429
  %v520 = vsel %vm518, %v519, %v429
  %v521 = vand.u32 %v520, 65535
  %v522 = vshrl.u32 %v520, 16
  %v524 = vmul.u32 %v521, 14564
  %v525 = vmul.u32 %v521, 58254
  %v526 = vmul.u32 %v522, 14564
  %v527 = vmul.u32 %v522, 58254
  %v528 = vshll.u32 %v525, 16
  %v529 = vshrl.u32 %v525, 16
  %v530 = vshll.u32 %v526, 16
  %v531 = vshrl.u32 %v526, 16
  %vm532 = vc.u32 %v524, %v528
  %v533 = vsel %vm532, 1, 0
  %v534 = vadd.s32 %v524, %v528
  %v535 = vadd.s32 %v527, %v533
  %vm536 = vc.u32 %v534, %v530
  %v537 = vsel %vm536, 1, 0
  %v538 = vadd.s32 %v534, %v530
  %v539 = vadd.s32 %v535, %v537
  %v540 = vadd.s32 %v539, %v529
  %v541 = vadd.s32 %v540, %v531
  %v542 = vshrl.u32 %v541, 3
  %v543 = vmul.u32 %v542, 9
  %v544 = vsub.s32 %v520, %v543
  %v545 = vsub.s32 0, %v544
  %v546 = vsel %vm518, %v545, %v544
  %vm547 = vcmp.lt.s32.totalorder %v430, 0
  %v548 = vsub.s32 0, %v430
  %v549 = vsel %vm547, %v548, %v430
  %v550 = vand.u32 %v549, 65535
  %v551 = vshrl.u32 %v549, 16
  %v553 = vmul.u32 %v550, 14564
  %v554 = vmul.u32 %v550, 58254
  %v555 = vmul.u32 %v551, 14564
  %v556 = vmul.u32 %v551, 58254
  %v557 = vshll.u32 %v554, 16
  %v558 = vshrl.u32 %v554, 16
  %v559 = vshll.u32 %v555, 16
  %v560 = vshrl.u32 %v555, 16
  %vm561 = vc.u32 %v553, %v557
  %v562 = vsel %vm561, 1, 0
  %v563 = vadd.s32 %v553, %v557
  %v564 = vadd.s32 %v556, %v562
  %vm565 = vc.u32 %v563, %v559
  %v566 = vsel %vm565, 1, 0
  %v567 = vadd.s32 %v563, %v559
  %v568 = vadd.s32 %v564, %v566
  %v569 = vadd.s32 %v568, %v558
  %v570 = vadd.s32 %v569, %v560
  %v571 = vshrl.u32 %v570, 3
  %v572 = vmul.u32 %v571, 9
  %v573 = vsub.s32 %v549, %v572
  %v574 = vsub.s32 0, %v573
  %v575 = vsel %vm547, %v574, %v573
  %vm576 = vcmp.ne.s32.totalorder %v459, 0
  %vm577 = vcmp.ne.s32.totalorder %v488, 0
  %vm578 = vcmp.ne.s32.totalorder %v517, 0
  %vm579 = vcmp.ne.s32.totalorder %v546, 0
  %vm580 = vcmp.ne.s32.totalorder %v575, 0
  %vm581 = vcmp.lt.s32.totalorder %v459, 0
  %vm582 = vcmp.lt.s32.totalorder %v488, 0
  %vm583 = vcmp.lt.s32.totalorder %v517, 0
  %vm584 = vcmp.lt.s32.totalorder %v546, 0
  %vm585 = vcmp.lt.s32.totalorder %v575, 0
  %vm586 = vmand %vm581, %vm576
  %vm587 = vmand %vm582, %vm577
  %vm588 = vmand %vm583, %vm578
  %vm589 = vmand %vm584, %vm579
  %vm590 = vmand %vm585, %vm580
  %v591 = vadd.s32 %v459, 9
  %v592 = vadd.s32 %v488, 9
  %v593 = vadd.s32 %v517, 9
  %v594 = vadd.s32 %v546, 9
  %v595 = vadd.s32 %v575, 9
  %v596 = vsel %vm586, %v591, %v459
  %v597 = vsel %vm587, %v592, %v488
  %v598 = vsel %vm588, %v593, %v517
  %v599 = vsel %vm589, %v594, %v546
  %v600 = vsel %vm590, %v595, %v575
  %vm601 = vcmp.eq.s32.totalorder %v596, 0
  %vm602 = vcmp.eq.s32.totalorder %v597, 0
  %vm603 = vcmp.eq.s32.totalorder %v598, 0
  %vm604 = vcmp.eq.s32.totalorder %v599, 0
  %vm605 = vcmp.eq.s32.totalorder %v600, 0
  %vm606 = vcmp.lt.s32.totalorder %v426, 45
  %vm607 = vcmp.lt.s32.totalorder %v427, 45
  %vm608 = vcmp.lt.s32.totalorder %v428, 45
  %vm609 = vcmp.lt.s32.totalorder %v429, 45
  %vm610 = vcmp.lt.s32.totalorder %v430, 45
  %vm611 = vmand %vm601, %vm606
  %vm612 = vmand %vm602, %vm607
  %vm613 = vmand %vm603, %vm608
  %vm614 = vmand %vm604, %vm609
  %vm615 = vmand %vm605, %vm610
  %v616 = vsel %vm611, %v407, 0.0
  %v617 = vsel %vm612, %v411, 0.0
  %v618 = vsel %vm613, %v415, 0.0
  %v619 = vsel %vm614, %v419, 0.0
  %v620 = vsel %vm615, %v423, 0.0
  %v621 = vsel %vm24, %v616, 0.0
  %v622 = vsel %vm24, %v617, 0.0
  %v623 = vadd.f32 %v621, %v622
  %v624 = vsel %vm24, %v618, 0.0
  %v625 = vadd.f32 %v623, %v624
  %v626 = vsel %vm24, %v619, 0.0
  %v627 = vadd.f32 %v625, %v626
  %v628 = vsel %vm24, %v620, 0.0
  %v629 = vadd.f32 %v627, %v628
  %v630 = vrot.slane %v629, 4
  %v631 = vadd.f32 %v629, %v630
  %v632 = vrot.slane %v631, 2
  %v633 = vadd.f32 %v631, %v632
  %v634 = vrot.slane %v633, 1
  %v635 = vadd.f32 %v633, %v634
  %v636 = vrcp.pop %v635
  %v637 = vmul.f32 %v635, %v636
  %v638 = vsub.f32 1.0, %v637
  %v639 = vmul.f32 %v636, %v638
  %v640 = vadd.f32 %v636, %v639
  %vm641 = vweird.f32 %v635
  %vm642 = vweird.f32 %v636
  %vm643 = vmor %vm641, %vm642
  %v644 = vsel %vm643, %v636, %v640
  %v645 = vand.u32 2147483647, %v635
  %vm646 = vcmp.eq.f32.partialorder %v645, 8.507059e+37
  %v647 = vand.u32 %v635, 2147483648
  %v648 = vor.u32 1.1754944e-38, %v647
  %v649 = vsel %vm646, %v648, %v644
  %v650 = vmul.f32 1.0, %v649
  %652 = vrot.lane.b32.xlu0 %v650, 32
  %v653 = vpop.permute.xlu0 %652
  %v655 = vmul.f32 %v407, %v653
  %v656 = vmul.f32 %v411, %v653
  %v657 = vmul.f32 %v415, %v653
  %v658 = vmul.f32 %v419, %v653
  %v659 = vmul.f32 %v423, %v653
  %vm660 = vcmask 523520
  %v661 = vsel %vm660, %v655, -inf
  %v662 = vrot.slane %v661, 4
  %v663 = vmax.f32 %v661, %v662
  %v664 = vrot.slane %v663, 2
  %v665 = vmax.f32 %v663, %v664
  %v666 = vrot.slane %v665, 1
  %v667 = vmax.f32 %v665, %v666
  %v668 = vsel %vm660, %v656, -inf
  %v669 = vrot.slane %v668, 4
  %v670 = vmax.f32 %v668, %v669
  %v671 = vrot.slane %v670, 2
  %v672 = vmax.f32 %v670, %v671
  %v673 = vrot.slane %v672, 1
  %v674 = vmax.f32 %v672, %v673
  %v675 = vsel %vm660, %v657, -inf
  %v676 = vrot.slane %v675, 4
  %v677 = vmax.f32 %v675, %v676
  %v678 = vrot.slane %v677, 2
  %v679 = vmax.f32 %v677, %v678
  %v680 = vrot.slane %v679, 1
  %v681 = vmax.f32 %v679, %v680
  %v682 = vsel %vm660, %v658, -inf
  %v683 = vrot.slane %v682, 4
  %v684 = vmax.f32 %v682, %v683
  %v685 = vrot.slane %v684, 2
  %v686 = vmax.f32 %v684, %v685
  %v687 = vrot.slane %v686, 1
  %v688 = vmax.f32 %v686, %v687
  %v689 = vsel %vm660, %v659, -inf
  %v690 = vrot.slane %v689, 4
  %v691 = vmax.f32 %v689, %v690
  %v692 = vrot.slane %v691, 2
  %v693 = vmax.f32 %v691, %v692
  %v694 = vrot.slane %v693, 1
  %v695 = vmax.f32 %v693, %v694
  %v696 = vsub.f32 %v655, %v667
  %v697 = vsub.f32 %v656, %v674
  %v698 = vsub.f32 %v657, %v681
  %v699 = vsub.f32 %v658, %v688
  %v700 = vsub.f32 %v659, %v695
  %v701 = vmul.f32 %v696, 1.442695
  %v702 = vpow.pop %v701
  %v703 = vmul.f32 %v697, 1.442695
  %v704 = vpow.pop %v703
  %v705 = vmul.f32 %v698, 1.442695
  %v706 = vpow.pop %v705
  %v707 = vmul.f32 %v699, 1.442695
  %v708 = vpow.pop %v707
  %v709 = vmul.f32 %v700, 1.442695
  %v710 = vpow.pop %v709
  %v711 = vsel %vm660, %v702, 0.0
  %v712 = vrot.slane %v711, 4
  %v713 = vadd.f32 %v711, %v712
  %v714 = vrot.slane %v713, 2
  %v715 = vadd.f32 %v713, %v714
  %v716 = vrot.slane %v715, 1
  %v717 = vadd.f32 %v715, %v716
  %v718 = vsel %vm660, %v704, 0.0
  %v719 = vrot.slane %v718, 4
  %v720 = vadd.f32 %v718, %v719
  %v721 = vrot.slane %v720, 2
  %v722 = vadd.f32 %v720, %v721
  %v723 = vrot.slane %v722, 1
  %v724 = vadd.f32 %v722, %v723
  %v725 = vsel %vm660, %v706, 0.0
  %v726 = vrot.slane %v725, 4
  %v727 = vadd.f32 %v725, %v726
  %v728 = vrot.slane %v727, 2
  %v729 = vadd.f32 %v727, %v728
  %v730 = vrot.slane %v729, 1
  %v731 = vadd.f32 %v729, %v730
  %v732 = vsel %vm660, %v708, 0.0
  %v733 = vrot.slane %v732, 4
  %v734 = vadd.f32 %v732, %v733
  %v735 = vrot.slane %v734, 2
  %v736 = vadd.f32 %v734, %v735
  %v737 = vrot.slane %v736, 1
  %v738 = vadd.f32 %v736, %v737
  %v739 = vsel %vm660, %v710, 0.0
  %v740 = vrot.slane %v739, 4
  %v741 = vadd.f32 %v739, %v740
  %v742 = vrot.slane %v741, 2
  %v743 = vadd.f32 %v741, %v742
  %v744 = vrot.slane %v743, 1
  %v745 = vadd.f32 %v743, %v744
  %v746 = vrcp.pop %v717
  %v747 = vmul.f32 %v717, %v746
  %v748 = vsub.f32 1.0, %v747
  %v749 = vmul.f32 %v746, %v748
  %v750 = vadd.f32 %v746, %v749
  %vm751 = vweird.f32 %v717
  %vm752 = vweird.f32 %v746
  %vm753 = vmor %vm751, %vm752
  %v754 = vsel %vm753, %v746, %v750
  %v755 = vand.u32 2147483647, %v717
  %vm756 = vcmp.eq.f32.partialorder %v755, 8.507059e+37
  %v757 = vand.u32 %v717, 2147483648
  %v758 = vor.u32 1.1754944e-38, %v757
  %v759 = vsel %vm756, %v758, %v754
  %v760 = vmul.f32 %v702, %v759
  %v761 = vrcp.pop %v724
  %v762 = vmul.f32 %v724, %v761
  %v763 = vsub.f32 1.0, %v762
  %v764 = vmul.f32 %v761, %v763
  %v765 = vadd.f32 %v761, %v764
  %vm766 = vweird.f32 %v724
  %vm767 = vweird.f32 %v761
  %vm768 = vmor %vm766, %vm767
  %v769 = vsel %vm768, %v761, %v765
  %v770 = vand.u32 2147483647, %v724
  %vm771 = vcmp.eq.f32.partialorder %v770, 8.507059e+37
  %v772 = vand.u32 %v724, 2147483648
  %v773 = vor.u32 1.1754944e-38, %v772
  %v774 = vsel %vm771, %v773, %v769
  %v775 = vmul.f32 %v704, %v774
  %v776 = vrcp.pop %v731
  %v777 = vmul.f32 %v731, %v776
  %v778 = vsub.f32 1.0, %v777
  %v779 = vmul.f32 %v776, %v778
  %v780 = vadd.f32 %v776, %v779
  %vm781 = vweird.f32 %v731
  %vm782 = vweird.f32 %v776
  %vm783 = vmor %vm781, %vm782
  %v784 = vsel %vm783, %v776, %v780
  %v785 = vand.u32 2147483647, %v731
  %vm786 = vcmp.eq.f32.partialorder %v785, 8.507059e+37
  %v787 = vand.u32 %v731, 2147483648
  %v788 = vor.u32 1.1754944e-38, %v787
  %v789 = vsel %vm786, %v788, %v784
  %v790 = vmul.f32 %v706, %v789
  %v791 = vrcp.pop %v738
  %v792 = vmul.f32 %v738, %v791
  %v793 = vsub.f32 1.0, %v792
  %v794 = vmul.f32 %v791, %v793
  %v795 = vadd.f32 %v791, %v794
  %vm796 = vweird.f32 %v738
  %vm797 = vweird.f32 %v791
  %vm798 = vmor %vm796, %vm797
  %v799 = vsel %vm798, %v791, %v795
  %v800 = vand.u32 2147483647, %v738
  %vm801 = vcmp.eq.f32.partialorder %v800, 8.507059e+37
  %v802 = vand.u32 %v738, 2147483648
  %v803 = vor.u32 1.1754944e-38, %v802
  %v804 = vsel %vm801, %v803, %v799
  %v805 = vmul.f32 %v708, %v804
  %v806 = vrcp.pop %v745
  %v807 = vmul.f32 %v745, %v806
  %v808 = vsub.f32 1.0, %v807
  %v809 = vmul.f32 %v806, %v808
  %v810 = vadd.f32 %v806, %v809
  %vm811 = vweird.f32 %v745
  %vm812 = vweird.f32 %v806
  %vm813 = vmor %vm811, %vm812
  %v814 = vsel %vm813, %v806, %v810
  %v815 = vand.u32 2147483647, %v745
  %vm816 = vcmp.eq.f32.partialorder %v815, 8.507059e+37
  %v817 = vand.u32 %v745, 2147483648
  %v818 = vor.u32 1.1754944e-38, %v817
  %v819 = vsel %vm816, %v818, %v814
  %v820 = vmul.f32 %v710, %v819
  %826 = vrot.lane.b32.xlu0 %v760, 96
  %v827 = vpop.permute.xlu0 %826
  %828 = vrot.lane.b32.xlu0 %v775, 96
  %v829 = vpop.permute.xlu0 %828
  %830 = vrot.lane.b32.xlu0 %v790, 96
  %v831 = vpop.permute.xlu0 %830
  %832 = vrot.lane.b32.xlu0 %v805, 96
  %v833 = vpop.permute.xlu0 %832
  %834 = vrot.lane.b32.xlu0 %v820, 96
  %v835 = vpop.permute.xlu0 %834
  %v836 = vsel %vm24, %v827, 0
  %v838 = vsel %vm24, %v829, 0
  %v840 = vsel %vm24, %v831, 0
  %v842 = vsel %vm24, %v833, 0
  %v844 = vsel %vm24, %v835, 0
  %846 = vmatpush.msra.mxu0 0.0
  %847 = vmatpush.msra.mxu0 0.0
  %848 = vmatpush.msra.mxu0 0.0
  %849 = vmatpush.msra.mxu0 0.0
  %850 = vmatpush.msra.mxu0 0.0
  %851 = vmatpush.msra.mxu0 0.0
  %852 = vmatpush.msra.mxu0 0.0
  %853 = vmatpush.msra.mxu0 0.0
  %854 = vmatpush.msra.mxu0 0.0
  %855 = vmatpush.msra.mxu0 0.0
  %856 = vmatpush.msra.mxu0 0.0
  %857 = vmatpush.msra.mxu0 0.0
  %v858 = vand.u32 %v19, 4294901760
  %859 = vmatpush.msra.mxu0 %v858
  %v860 = vand.u32 %v18, 4294901760
  %861 = vmatpush.msra.mxu0 %v860
  %v862 = vand.u32 %v17, 4294901760
  %863 = vmatpush.msra.mxu0 %v862
  %v864 = vand.u32 %v16, 4294901760
  %865 = vmatpush.msra.mxu0 %v864
  %v866 = vand.u32 %v836, 4294901760
  %v867 = vsub.f32 %v836, %v866
  %v868 = vand.u32 %v867, 4294901760
  %v869 = vsub.f32 %v867, %v868
  %v870 = vand.u32 %v869, 4294901760
  %871 = vmatmul.f32.gmra.mxu0 %v870
  %v872 = vpop.f32.mrf.mxu0
  %v873 = vadd.f32 0.0, %v872
  %v874 = vand.u32 %v838, 4294901760
  %v875 = vsub.f32 %v838, %v874
  %v876 = vand.u32 %v875, 4294901760
  %v877 = vsub.f32 %v875, %v876
  %v878 = vand.u32 %v877, 4294901760
  %879 = vmatmul.f32.gmra.mxu0 %v878
  %v880 = vpop.f32.mrf.mxu0
  %v881 = vadd.f32 0.0, %v880
  %v882 = vand.u32 %v840, 4294901760
  %v883 = vsub.f32 %v840, %v882
  %v884 = vand.u32 %v883, 4294901760
  %v885 = vsub.f32 %v883, %v884
  %v886 = vand.u32 %v885, 4294901760
  %887 = vmatmul.f32.gmra.mxu0 %v886
  %v888 = vpop.f32.mrf.mxu0
  %v889 = vadd.f32 0.0, %v888
  %v890 = vand.u32 %v842, 4294901760
  %v891 = vsub.f32 %v842, %v890
  %v892 = vand.u32 %v891, 4294901760
  %v893 = vsub.f32 %v891, %v892
  %v894 = vand.u32 %v893, 4294901760
  %895 = vmatmul.f32.gmra.mxu0 %v894
  %v896 = vpop.f32.mrf.mxu0
  %v897 = vadd.f32 0.0, %v896
  %v898 = vand.u32 %v844, 4294901760
  %v899 = vsub.f32 %v844, %v898
  %v900 = vand.u32 %v899, 4294901760
  %v901 = vsub.f32 %v899, %v900
  %v902 = vand.u32 %v901, 4294901760
  %903 = vmatmul.f32.gmra.mxu0 %v902
  %v904 = vpop.f32.mrf.mxu0
  %v905 = vadd.f32 0.0, %v904
  %906 = vdwg.mxu0
  %907 = vmatpush.msra.mxu0 0.0
  %908 = vmatpush.msra.mxu0 0.0
  %909 = vmatpush.msra.mxu0 0.0
  %910 = vmatpush.msra.mxu0 0.0
  %911 = vmatpush.msra.mxu0 0.0
  %912 = vmatpush.msra.mxu0 0.0
  %913 = vmatpush.msra.mxu0 0.0
  %914 = vmatpush.msra.mxu0 0.0
  %915 = vmatpush.msra.mxu0 0.0
  %916 = vmatpush.msra.mxu0 0.0
  %917 = vmatpush.msra.mxu0 0.0
  %918 = vmatpush.msra.mxu0 0.0
  %v919 = vand.u32 %v19, 4294901760
  %v920 = vsub.f32 %v19, %v919
  %v921 = vand.u32 %v920, 4294901760
  %v922 = vsub.f32 %v920, %v921
  %v923 = vand.u32 %v922, 4294901760
  %924 = vmatpush.msra.mxu0 %v923
  %v925 = vand.u32 %v18, 4294901760
  %v926 = vsub.f32 %v18, %v925
  %v927 = vand.u32 %v926, 4294901760
  %v928 = vsub.f32 %v926, %v927
  %v929 = vand.u32 %v928, 4294901760
  %930 = vmatpush.msra.mxu0 %v929
  %v931 = vand.u32 %v17, 4294901760
  %v932 = vsub.f32 %v17, %v931
  %v933 = vand.u32 %v932, 4294901760
  %v934 = vsub.f32 %v932, %v933
  %v935 = vand.u32 %v934, 4294901760
  %936 = vmatpush.msra.mxu0 %v935
  %v937 = vand.u32 %v16, 4294901760
  %v938 = vsub.f32 %v16, %v937
  %v939 = vand.u32 %v938, 4294901760
  %v940 = vsub.f32 %v938, %v939
  %v941 = vand.u32 %v940, 4294901760
  %942 = vmatpush.msra.mxu0 %v941
  %v943 = vand.u32 %v836, 4294901760
  %944 = vmatmul.f32.gmra.mxu0 %v943
  %v945 = vpop.f32.mrf.mxu0
  %v946 = vadd.f32 %v873, %v945
  %v947 = vand.u32 %v838, 4294901760
  %948 = vmatmul.f32.gmra.mxu0 %v947
  %v949 = vpop.f32.mrf.mxu0
  %v950 = vadd.f32 %v881, %v949
  %v951 = vand.u32 %v840, 4294901760
  %952 = vmatmul.f32.gmra.mxu0 %v951
  %v953 = vpop.f32.mrf.mxu0
  %v954 = vadd.f32 %v889, %v953
  %v955 = vand.u32 %v842, 4294901760
  %956 = vmatmul.f32.gmra.mxu0 %v955
  %v957 = vpop.f32.mrf.mxu0
  %v958 = vadd.f32 %v897, %v957
  %v959 = vand.u32 %v844, 4294901760
  %960 = vmatmul.f32.gmra.mxu0 %v959
  %v961 = vpop.f32.mrf.mxu0
  %v962 = vadd.f32 %v905, %v961
  %963 = vdwg.mxu0
  %964 = vmatpush.msra.mxu0 0.0
  %965 = vmatpush.msra.mxu0 0.0
  %966 = vmatpush.msra.mxu0 0.0
  %967 = vmatpush.msra.mxu0 0.0
  %968 = vmatpush.msra.mxu0 0.0
  %969 = vmatpush.msra.mxu0 0.0
  %970 = vmatpush.msra.mxu0 0.0
  %971 = vmatpush.msra.mxu0 0.0
  %972 = vmatpush.msra.mxu0 0.0
  %973 = vmatpush.msra.mxu0 0.0
  %974 = vmatpush.msra.mxu0 0.0
  %975 = vmatpush.msra.mxu0 0.0
  %v976 = vand.u32 %v19, 4294901760
  %v977 = vsub.f32 %v19, %v976
  %978 = vmatpush.msra.mxu0 %v977
  %v979 = vand.u32 %v18, 4294901760
  %v980 = vsub.f32 %v18, %v979
  %981 = vmatpush.msra.mxu0 %v980
  %v982 = vand.u32 %v17, 4294901760
  %v983 = vsub.f32 %v17, %v982
  %984 = vmatpush.msra.mxu0 %v983
  %v985 = vand.u32 %v16, 4294901760
  %v986 = vsub.f32 %v16, %v985
  %987 = vmatpush.msra.mxu0 %v986
  %v988 = vand.u32 %v836, 4294901760
  %v989 = vsub.f32 %v836, %v988
  %990 = vmatmul.f32.gmra.mxu0 %v989
  %v991 = vpop.f32.mrf.mxu0
  %v992 = vadd.f32 %v946, %v991
  %v993 = vand.u32 %v838, 4294901760
  %v994 = vsub.f32 %v838, %v993
  %995 = vmatmul.f32.gmra.mxu0 %v994
  %v996 = vpop.f32.mrf.mxu0
  %v997 = vadd.f32 %v950, %v996
  %v998 = vand.u32 %v840, 4294901760
  %v999 = vsub.f32 %v840, %v998
  %1000 = vmatmul.f32.gmra.mxu0 %v999
  %v1001 = vpop.f32.mrf.mxu0
  %v1002 = vadd.f32 %v954, %v1001
  %v1003 = vand.u32 %v842, 4294901760
  %v1004 = vsub.f32 %v842, %v1003
  %1005 = vmatmul.f32.gmra.mxu0 %v1004
  %v1006 = vpop.f32.mrf.mxu0
  %v1007 = vadd.f32 %v958, %v1006
  %v1008 = vand.u32 %v844, 4294901760
  %v1009 = vsub.f32 %v844, %v1008
  %1010 = vmatmul.f32.gmra.mxu0 %v1009
  %v1011 = vpop.f32.mrf.mxu0
  %v1012 = vadd.f32 %v962, %v1011
  %1013 = vdwg.mxu0
  %1014 = vmatpush.msra.mxu0 0.0
  %1015 = vmatpush.msra.mxu0 0.0
  %1016 = vmatpush.msra.mxu0 0.0
  %1017 = vmatpush.msra.mxu0 0.0
  %1018 = vmatpush.msra.mxu0 0.0
  %1019 = vmatpush.msra.mxu0 0.0
  %1020 = vmatpush.msra.mxu0 0.0
  %1021 = vmatpush.msra.mxu0 0.0
  %1022 = vmatpush.msra.mxu0 0.0
  %1023 = vmatpush.msra.mxu0 0.0
  %1024 = vmatpush.msra.mxu0 0.0
  %1025 = vmatpush.msra.mxu0 0.0
  %v1026 = vand.u32 %v19, 4294901760
  %1027 = vmatpush.msra.mxu0 %v1026
  %v1028 = vand.u32 %v18, 4294901760
  %1029 = vmatpush.msra.mxu0 %v1028
  %v1030 = vand.u32 %v17, 4294901760
  %1031 = vmatpush.msra.mxu0 %v1030
  %v1032 = vand.u32 %v16, 4294901760
  %1033 = vmatpush.msra.mxu0 %v1032
  %v1034 = vand.u32 %v836, 4294901760
  %v1035 = vsub.f32 %v836, %v1034
  %v1036 = vand.u32 %v1035, 4294901760
  %1037 = vmatmul.f32.gmra.mxu0 %v1036
  %v1038 = vpop.f32.mrf.mxu0
  %v1039 = vadd.f32 %v992, %v1038
  %v1040 = vand.u32 %v838, 4294901760
  %v1041 = vsub.f32 %v838, %v1040
  %v1042 = vand.u32 %v1041, 4294901760
  %1043 = vmatmul.f32.gmra.mxu0 %v1042
  %v1044 = vpop.f32.mrf.mxu0
  %v1045 = vadd.f32 %v997, %v1044
  %v1046 = vand.u32 %v840, 4294901760
  %v1047 = vsub.f32 %v840, %v1046
  %v1048 = vand.u32 %v1047, 4294901760
  %1049 = vmatmul.f32.gmra.mxu0 %v1048
  %v1050 = vpop.f32.mrf.mxu0
  %v1051 = vadd.f32 %v1002, %v1050
  %v1052 = vand.u32 %v842, 4294901760
  %v1053 = vsub.f32 %v842, %v1052
  %v1054 = vand.u32 %v1053, 4294901760
  %1055 = vmatmul.f32.gmra.mxu0 %v1054
  %v1056 = vpop.f32.mrf.mxu0
  %v1057 = vadd.f32 %v1007, %v1056
  %v1058 = vand.u32 %v844, 4294901760
  %v1059 = vsub.f32 %v844, %v1058
  %v1060 = vand.u32 %v1059, 4294901760
  %1061 = vmatmul.f32.gmra.mxu0 %v1060
  %v1062 = vpop.f32.mrf.mxu0
  %v1063 = vadd.f32 %v1012, %v1062
  %1064 = vdwg.mxu0
  %1065 = vmatpush.msra.mxu0 0.0
  %1066 = vmatpush.msra.mxu0 0.0
  %1067 = vmatpush.msra.mxu0 0.0
  %1068 = vmatpush.msra.mxu0 0.0
  %1069 = vmatpush.msra.mxu0 0.0
  %1070 = vmatpush.msra.mxu0 0.0
  %1071 = vmatpush.msra.mxu0 0.0
  %1072 = vmatpush.msra.mxu0 0.0
  %1073 = vmatpush.msra.mxu0 0.0
  %1074 = vmatpush.msra.mxu0 0.0
  %1075 = vmatpush.msra.mxu0 0.0
  %1076 = vmatpush.msra.mxu0 0.0
  %v1077 = vand.u32 %v19, 4294901760
  %v1078 = vsub.f32 %v19, %v1077
  %v1079 = vand.u32 %v1078, 4294901760
  %1080 = vmatpush.msra.mxu0 %v1079
  %v1081 = vand.u32 %v18, 4294901760
  %v1082 = vsub.f32 %v18, %v1081
  %v1083 = vand.u32 %v1082, 4294901760
  %1084 = vmatpush.msra.mxu0 %v1083
  %v1085 = vand.u32 %v17, 4294901760
  %v1086 = vsub.f32 %v17, %v1085
  %v1087 = vand.u32 %v1086, 4294901760
  %1088 = vmatpush.msra.mxu0 %v1087
  %v1089 = vand.u32 %v16, 4294901760
  %v1090 = vsub.f32 %v16, %v1089
  %v1091 = vand.u32 %v1090, 4294901760
  %1092 = vmatpush.msra.mxu0 %v1091
  %v1093 = vand.u32 %v836, 4294901760
  %1094 = vmatmul.f32.gmra.mxu0 %v1093
  %v1095 = vpop.f32.mrf.mxu0
  %v1096 = vadd.f32 %v1039, %v1095
  %v1097 = vand.u32 %v838, 4294901760
  %1098 = vmatmul.f32.gmra.mxu0 %v1097
  %v1099 = vpop.f32.mrf.mxu0
  %v1100 = vadd.f32 %v1045, %v1099
  %v1101 = vand.u32 %v840, 4294901760
  %1102 = vmatmul.f32.gmra.mxu0 %v1101
  %v1103 = vpop.f32.mrf.mxu0
  %v1104 = vadd.f32 %v1051, %v1103
  %v1105 = vand.u32 %v842, 4294901760
  %1106 = vmatmul.f32.gmra.mxu0 %v1105
  %v1107 = vpop.f32.mrf.mxu0
  %v1108 = vadd.f32 %v1057, %v1107
  %v1109 = vand.u32 %v844, 4294901760
  %1110 = vmatmul.f32.gmra.mxu0 %v1109
  %v1111 = vpop.f32.mrf.mxu0
  %v1112 = vadd.f32 %v1063, %v1111
  %1113 = vdwg.mxu0
  %1114 = vmatpush.msra.mxu0 0.0
  %1115 = vmatpush.msra.mxu0 0.0
  %1116 = vmatpush.msra.mxu0 0.0
  %1117 = vmatpush.msra.mxu0 0.0
  %1118 = vmatpush.msra.mxu0 0.0
  %1119 = vmatpush.msra.mxu0 0.0
  %1120 = vmatpush.msra.mxu0 0.0
  %1121 = vmatpush.msra.mxu0 0.0
  %1122 = vmatpush.msra.mxu0 0.0
  %1123 = vmatpush.msra.mxu0 0.0
  %1124 = vmatpush.msra.mxu0 0.0
  %1125 = vmatpush.msra.mxu0 0.0
  %v1126 = vand.u32 %v19, 4294901760
  %1127 = vmatpush.msra.mxu0 %v1126
  %v1128 = vand.u32 %v18, 4294901760
  %1129 = vmatpush.msra.mxu0 %v1128
  %v1130 = vand.u32 %v17, 4294901760
  %1131 = vmatpush.msra.mxu0 %v1130
  %v1132 = vand.u32 %v16, 4294901760
  %1133 = vmatpush.msra.mxu0 %v1132
  %v1134 = vand.u32 %v836, 4294901760
  %1135 = vmatmul.f32.gmra.mxu0 %v1134
  %v1136 = vpop.f32.mrf.mxu0
  %v1137 = vadd.f32 %v1096, %v1136
  %v1138 = vand.u32 %v838, 4294901760
  %1139 = vmatmul.f32.gmra.mxu0 %v1138
  %v1140 = vpop.f32.mrf.mxu0
  %v1141 = vadd.f32 %v1100, %v1140
  %v1142 = vand.u32 %v840, 4294901760
  %1143 = vmatmul.f32.gmra.mxu0 %v1142
  %v1144 = vpop.f32.mrf.mxu0
  %v1145 = vadd.f32 %v1104, %v1144
  %v1146 = vand.u32 %v842, 4294901760
  %1147 = vmatmul.f32.gmra.mxu0 %v1146
  %v1148 = vpop.f32.mrf.mxu0
  %v1149 = vadd.f32 %v1108, %v1148
  %v1150 = vand.u32 %v844, 4294901760
  %1151 = vmatmul.f32.gmra.mxu0 %v1150
  %v1152 = vpop.f32.mrf.mxu0
  %v1153 = vadd.f32 %v1112, %v1152
  %1154 = vdwg.mxu0
  %1155 = vst.msk [vmem:[%s2] sm:$0xff] %vm24, %v1137
  %1156 = vst.msk [vmem:[%s2 + $0x8] sm:$0xff] %vm24, %v1141
  %1157 = vst.msk [vmem:[%s2 + $0x10] sm:$0xff] %vm24, %v1145
  %1158 = vst.msk [vmem:[%s2 + $0x18] sm:$0xff] %vm24, %v1149
  %1159 = vst.msk [vmem:[%s2 + $0x20] sm:$0xff] %vm24, %v1153
  // Predicated region
  $region10: #{tpu_custom_call.1} parent=0 // pred_check
    _
  $region11: #{tpu_custom_call.1} parent=0 // pred_check_branch
    %1161 = sbr.rel (0) target = $region13
  $region12: #{tpu_custom_call.1} parent=0 // pred_region
    _
  $region13: #{tpu_custom_call.1} parent=0 // pred_fallthru
    _
  // Predicated region
  $region14: #{tpu_custom_call.1} parent=0 // pred_check
    _
  $region15: #{tpu_custom_call.1} parent=0 // pred_check_branch
    %1163 = sbr.rel (0) target = $region17
  $region16: #{tpu_custom_call.1} parent=0 // pred_region
    _
  $region17: #{tpu_custom_call.1} parent=0 // pred_fallthru
    _

</llo_original>
